<compile_context>
chip_gen: v6e
topology: v6e:2x2x1
jax: 0.10.0
libtpu: 0.0.40
codegen_flags: <defaults>
</compile_context>

<pallas_src>
import jax
import jax.numpy as jnp
from jax.experimental import pallas as pl
from jax.experimental.pallas import tpu as pltpu


def hybrid_embed_kernel(packed_ref, iota_ref, rhs_ref, w1_ref, b1_ref, b2_ref,
                        out_ref):
    packed = packed_ref[...]                 # [TN, 2] f32: (id-as-f32, label)
    ids_f = packed[:, 0:1]                   # [TN, 1] ids (exact small ints)
    lab = packed[:, 1:2]                     # [TN, 1] labels (NaN => discrete)

    is_cont = jnp.isfinite(lab)              # [TN, 1] bool

    vocab = iota_ref.shape[1]
    ids = ids_f.astype(jnp.int32)
    # PyTorch negative-index convention (padding_idx=-100 -> row V-100).
    ids = jnp.where(ids < 0, ids + vocab, ids)
    # Continuous rows get id -1: never matches the iota row -> zero one-hot,
    # so no final select over the discrete result is needed.
    safe_ids = jnp.where(is_cont, -1, ids)   # [TN, 1]

    # --- discrete branch lhs: one-hot rows (zero for continuous tokens) ---
    onehot = (safe_ids == iota_ref[...])                      # [TN, V] bool

    # --- continuous branch lhs: Linear(1,H) -> ReLU, masked for discrete ---
    v = jnp.where(is_cont, lab, 0.0)                          # [TN, 1]
    h = jnp.maximum(v * w1_ref[...] + b1_ref[...], 0.0)       # [TN, H] f32
    h = jnp.where(is_cont, h, 0.0)                            # [TN, H]

    # --- single fused matmul: [TN, V+H] @ [V+H, E] (f32 accumulation) ---
    mm_dtype = rhs_ref.dtype
    lhs = jnp.concatenate([onehot.astype(mm_dtype), h.astype(mm_dtype)],
                          axis=1)                             # [TN, V+H]
    acc = jnp.dot(lhs, rhs_ref[...],
                  preferred_element_type=jnp.float32)         # [TN, E] f32
    acc = acc + jnp.where(is_cont, b2_ref[...], 0.0)          # b2 only if cont

    out_ref[...] = acc.astype(out_ref.dtype)


def _round_up(x, m):
    return (x + m - 1) // m * m


def hybrid_embedding(x_ids, x_labels, table, w1, b1, w2, b2, *,
                     token_tile=2048, out_dtype=jnp.float32,
                     matmul_dtype=None):
    """x_ids, x_labels: [B, S]; returns [B, S, E] in out_dtype."""
    B, S = x_ids.shape
    N = B * S
    V, E = table.shape
    H = w1.shape[1]
    assert V < (1 << 24), "ids are packed exactly into f32 lanes"

    # Fused rhs: [V+H, E] = [table ; w2], in the matmul compute dtype.
    if matmul_dtype is None:
        matmul_dtype = jnp.promote_types(table.dtype, w2.dtype)
    rhs = jnp.concatenate([table.astype(matmul_dtype),
                           w2.astype(matmul_dtype)], axis=0)

    # Adaptive token tile: as large as requested (multiple of 8), but keep at
    # least 2 grid steps when there is enough work. Tiny inputs fall back to
    # an 8-row tile.
    tile = max(8, min(_round_up(token_tile, 8), _round_up(pl.cdiv(N, 2), 8)))
    n_steps = pl.cdiv(N, tile)
    if n_steps > 1 and n_steps % 2 == 1:
        n_steps += 1          # even grid -> both v7x TensorCores stay busy
    n_pad = n_steps * tile

    # Pack ids + labels into a single [N, 2] f32 block (one side-input DMA per
    # grid step). Padded rows get (0, 0.0): finite label -> continuous path
    # with value 0, result sliced away below.
    packed = jnp.concatenate(
        [x_ids.reshape(N, 1).astype(jnp.float32),
         x_labels.reshape(N, 1).astype(jnp.float32)], axis=1)
    if n_pad != N:
        packed = jnp.pad(packed, ((0, n_pad - N), (0, 0)))

    iota_row = jnp.arange(V, dtype=jnp.int32).reshape(1, V)

    out = pl.pallas_call(
        hybrid_embed_kernel,
        out_shape=jax.ShapeDtypeStruct((n_pad, E), out_dtype),
        grid_spec=pltpu.PrefetchScalarGridSpec(
            num_scalar_prefetch=0,
            grid=(n_steps,),
            in_specs=[
                pl.BlockSpec((tile, 2), lambda i: (i, 0)),    # packed ids/labels
                pl.BlockSpec((1, V), lambda i: (0, 0)),       # vocab index row
                pl.BlockSpec((V + H, E), lambda i: (0, 0)),   # fused [table; w2]
                pl.BlockSpec((1, H), lambda i: (0, 0)),       # w1 (Linear(1,H).T)
                pl.BlockSpec((1, H), lambda i: (0, 0)),       # b1
                pl.BlockSpec((1, E), lambda i: (0, 0)),       # b2
            ],
            out_specs=pl.BlockSpec((tile, E), lambda i: (i, 0)),
        ),
        compiler_params=pltpu.CompilerParams(
            dimension_semantics=("parallel",),
            vmem_limit_bytes=32 * 1024 * 1024),
    )(packed, iota_row, rhs, w1, b1, b2)

    return out[:N].reshape(B, S, E)


def _reference(x_ids, x_labels, table, w1, b1, w2, b2):
    is_cont = jnp.isfinite(x_labels)
    disc = table.astype(jnp.float32)[jnp.where(is_cont, 0, x_ids)]  # [B, S, E]
    v = jnp.where(is_cont, x_labels, 0.0)[..., None]                # [B, S, 1]
    h = jnp.maximum(v * w1[None] + b1[None], 0.0)                   # [B, S, H]
    cont = jnp.einsum("bsh,he->bse", h, w2.astype(jnp.float32)) + b2[None]
    return jnp.where(is_cont[..., None], cont, disc)


def _make_inputs(key, B, S, V):
    k_ids, k_lab, k_msk = jax.random.split(key, 3)
    x_ids = jax.random.randint(k_ids, (B, S), 0, V, dtype=jnp.int32)
    cont_vals = jax.random.normal(k_lab, (B, S), dtype=jnp.float32)
    is_cont = jax.random.bernoulli(k_msk, 0.5, (B, S))
    x_labels = jnp.where(is_cont, cont_vals, jnp.nan)
    return x_ids, x_labels


if __name__ == "__main__":
    # Module hyper-params (match HybridEmbedding defaults).
    V = 128          # discrete_vocab_size
    H = 128          # continuous_hidden_dim
    E = 128          # embedding_dim
    PAD_IDX = -100   # padding_idx -> effective row V + PAD_IDX = 28 (zeroed)

    key = jax.random.PRNGKey(0)
    k_tab, k_w1, k_b1, k_w2, k_b2, k_in1, k_in2 = jax.random.split(key, 7)

    # Deterministic synthetic parameters.
    table = jax.random.normal(k_tab, (V, E), dtype=jnp.float32)
    table = table.at[V + PAD_IDX].set(0.0)                          # padding row zeroed
    w1 = jax.random.normal(k_w1, (1, H), dtype=jnp.float32) * 0.5   # Linear(1,H).weight.T
    b1 = jax.random.normal(k_b1, (1, H), dtype=jnp.float32) * 0.1
    w2 = jax.random.normal(k_w2, (H, E), dtype=jnp.float32) * (1.0 / jnp.sqrt(H))
    b2 = jax.random.normal(k_b2, (1, E), dtype=jnp.float32) * 0.1

    # --- test 1: small shapes (B=2, S=8) -> adaptive tile of 8, grid of 2 ---
    B, S = 2, 8
    x_ids, x_labels = _make_inputs(k_in1, B, S, V)
    out = hybrid_embedding(x_ids, x_labels, table, w1, b1, w2, b2)
    out = jax.block_until_ready(out)
    ref = _reference(x_ids, x_labels, table, w1, b1, w2, b2)
    assert out.shape == (B, S, E) and out.dtype == jnp.float32
    assert jnp.allclose(out, ref, atol=1e-4, rtol=1e-4)

    # --- test 2: larger token count (N=2048 -> tile 1024, even grid of 2) ---
    B2, S2 = 4, 512
    x_ids2, x_labels2 = _make_inputs(k_in2, B2, S2, V)
    out2 = hybrid_embedding(x_ids2, x_labels2, table, w1, b1, w2, b2)
    out2 = jax.block_until_ready(out2)
    ref2 = _reference(x_ids2, x_labels2, table, w1, b1, w2, b2)
    assert out2.shape == (B2, S2, E) and out2.dtype == jnp.float32
    assert jnp.allclose(out2, ref2, atol=1e-4, rtol=1e-4)

    # --- test 3: bf16 weights (bf16 MXU rate) + bf16 output (half the HBM
    #     writeback), relaxed tolerance ---
    out3 = hybrid_embedding(x_ids2, x_labels2,
                            table.astype(jnp.bfloat16), w1, b1,
                            w2.astype(jnp.bfloat16), b2,
                            out_dtype=jnp.bfloat16)
    out3 = jax.block_until_ready(out3)
    assert out3.shape == (B2, S2, E) and out3.dtype == jnp.bfloat16
    assert jnp.allclose(out3.astype(jnp.float32), ref2, atol=1e-1, rtol=5e-2)

    print("KERNEL_OK")
</pallas_src>

<mosaic_0001>
module attributes {stable_mosaic.version = 11 : i64} {
  func.func @hybrid_embed_kernel(%arg0: i32, %arg1: memref<8x2xf32, #tpu.memory_space<vmem>>, %arg2: memref<1x128xi32, #tpu.memory_space<vmem>>, %arg3: memref<256x128xf32, #tpu.memory_space<vmem>>, %arg4: memref<1x128xf32, #tpu.memory_space<vmem>>, %arg5: memref<1x128xf32, #tpu.memory_space<vmem>>, %arg6: memref<1x128xf32, #tpu.memory_space<vmem>>, %arg7: memref<8x128xf32, #tpu.memory_space<vmem>>) attributes {dimension_semantics = [#tpu.dimension_semantics<parallel>], iteration_bounds = array<i64: 2>, scalar_prefetch = 0 : i64, scratch_operands = 0 : i64, tpu.core_type = #tpu.core_type<tc>, window_params = [{transform_indices = @transform_0, window_bounds = array<i64: 8, 2>}, {pipeline_mode = #tpu.pipeline_mode<synchronous>, transform_indices = @transform_1, window_bounds = array<i64: 1, 128>}, {pipeline_mode = #tpu.pipeline_mode<synchronous>, transform_indices = @transform_2, window_bounds = array<i64: 256, 128>}, {pipeline_mode = #tpu.pipeline_mode<synchronous>, transform_indices = @transform_3, window_bounds = array<i64: 1, 128>}, {pipeline_mode = #tpu.pipeline_mode<synchronous>, transform_indices = @transform_4, window_bounds = array<i64: 1, 128>}, {pipeline_mode = #tpu.pipeline_mode<synchronous>, transform_indices = @transform_5, window_bounds = array<i64: 1, 128>}, {transform_indices = @transform_6, window_bounds = array<i64: 8, 128>}]} {
    %c0 = arith.constant 0 : index
    %c0_0 = arith.constant 0 : index
    %0 = vector.load %arg1[%c0, %c0_0] : memref<8x2xf32, #tpu.memory_space<vmem>>, vector<8x2xf32>
    %1 = vector.extract_strided_slice %0 {offsets = [0, 0], sizes = [8, 1], strides = [1, 1]} : vector<8x2xf32> to vector<8x1xf32>
    %2 = vector.extract_strided_slice %0 {offsets = [0, 1], sizes = [8, 1], strides = [1, 1]} : vector<8x2xf32> to vector<8x1xf32>
    %3 = tpu.weird %2 : vector<8x1xf32> -> vector<8x1xi1>
    %cst = arith.constant dense<true> : vector<8x1xi1>
    %4 = arith.xori %3, %cst : vector<8x1xi1>
    %5 = arith.fptosi %1 : vector<8x1xf32> to vector<8x1xi32>
    %c0_i32 = arith.constant 0 : i32
    %6 = vector.broadcast %c0_i32 : i32 to vector<8x1xi32>
    %7 = arith.cmpi slt, %5, %6 : vector<8x1xi32>
    %c128_i32 = arith.constant 128 : i32
    %8 = vector.broadcast %c128_i32 : i32 to vector<8x1xi32>
    %9 = arith.addi %5, %8 : vector<8x1xi32>
    %10 = arith.select %7, %9, %5 : vector<8x1xi1>, vector<8x1xi32>
    %c-1_i32 = arith.constant -1 : i32
    %11 = vector.broadcast %c-1_i32 : i32 to vector<8x1xi32>
    %12 = arith.select %4, %11, %10 : vector<8x1xi1>, vector<8x1xi32>
    %c0_1 = arith.constant 0 : index
    %c0_2 = arith.constant 0 : index
    %13 = vector.load %arg2[%c0_1, %c0_2] : memref<1x128xi32, #tpu.memory_space<vmem>>, vector<1x128xi32>
    %14 = vector.broadcast %12 : vector<8x1xi32> to vector<8x128xi32>
    %15 = vector.broadcast %13 : vector<1x128xi32> to vector<8x128xi32>
    %16 = arith.cmpi eq, %14, %15 : vector<8x128xi32>
    %cst_3 = arith.constant 0.000000e+00 : f32
    %17 = vector.broadcast %cst_3 : f32 to vector<8x1xf32>
    %18 = arith.select %4, %2, %17 : vector<8x1xi1>, vector<8x1xf32>
    %c0_4 = arith.constant 0 : index
    %c0_5 = arith.constant 0 : index
    %19 = vector.load %arg4[%c0_4, %c0_5] : memref<1x128xf32, #tpu.memory_space<vmem>>, vector<1x128xf32>
    %20 = vector.broadcast %18 : vector<8x1xf32> to vector<8x128xf32>
    %21 = vector.broadcast %19 : vector<1x128xf32> to vector<8x128xf32>
    %22 = arith.mulf %20, %21 : vector<8x128xf32>
    %c0_6 = arith.constant 0 : index
    %c0_7 = arith.constant 0 : index
    %23 = vector.load %arg5[%c0_6, %c0_7] : memref<1x128xf32, #tpu.memory_space<vmem>>, vector<1x128xf32>
    %24 = vector.broadcast %23 : vector<1x128xf32> to vector<8x128xf32>
    %25 = arith.addf %22, %24 : vector<8x128xf32>
    %cst_8 = arith.constant 0.000000e+00 : f32
    %26 = vector.broadcast %cst_8 : f32 to vector<8x128xf32>
    %27 = arith.maximumf %25, %26 : vector<8x128xf32>
    %cst_9 = arith.constant 0.000000e+00 : f32
    %28 = vector.shape_cast %4 : vector<8x1xi1> to vector<8x1xi1>
    %29 = vector.broadcast %28 : vector<8x1xi1> to vector<8x128xi1>
    %30 = vector.broadcast %cst_9 : f32 to vector<8x128xf32>
    %31 = arith.select %29, %27, %30 : vector<8x128xi1>, vector<8x128xf32>
    %32 = arith.extui %16 : vector<8x128xi1> to vector<8x128xi32>
    %33 = arith.sitofp %32 : vector<8x128xi32> to vector<8x128xf32>
    %34 = tpu.concatenate %33, %31 in 1 : vector<8x128xf32>, vector<8x128xf32> -> vector<8x256xf32>
    %c0_10 = arith.constant 0 : index
    %c0_11 = arith.constant 0 : index
    %35 = vector.load %arg3[%c0_10, %c0_11] : memref<256x128xf32, #tpu.memory_space<vmem>>, vector<256x128xf32>
    %cst_12 = arith.constant dense<0.000000e+00> : vector<8x128xf32>
    %36 = tpu.matmul %34, %35, %cst_12 {dimension_numbers = #tpu.dot_dimension_numbers<[1], [0], [0], [1], [0, 0, 1, 1], [], []>} : vector<8x256xf32>, vector<256x128xf32>, vector<8x128xf32> -> vector<8x128xf32>
    %c0_13 = arith.constant 0 : index
    %c0_14 = arith.constant 0 : index
    %37 = vector.load %arg6[%c0_13, %c0_14] : memref<1x128xf32, #tpu.memory_space<vmem>>, vector<1x128xf32>
    %cst_15 = arith.constant 0.000000e+00 : f32
    %38 = vector.shape_cast %4 : vector<8x1xi1> to vector<8x1xi1>
    %39 = vector.broadcast %38 : vector<8x1xi1> to vector<8x128xi1>
    %40 = vector.shape_cast %37 : vector<1x128xf32> to vector<1x128xf32>
    %41 = vector.broadcast %40 : vector<1x128xf32> to vector<8x128xf32>
    %42 = vector.broadcast %cst_15 : f32 to vector<8x128xf32>
    %43 = arith.select %39, %41, %42 : vector<8x128xi1>, vector<8x128xf32>
    %44 = arith.addf %36, %43 : vector<8x128xf32>
    %c0_16 = arith.constant 0 : index
    %c0_17 = arith.constant 0 : index
    %45 = vector.load %arg7[%c0_16, %c0_17] : memref<8x128xf32, #tpu.memory_space<vmem>>, vector<8x128xf32>
    tpu.vector_store %arg7[%c0_16, %c0_17], %44 {strides = array<i32>} : memref<8x128xf32, #tpu.memory_space<vmem>>, vector<8x128xf32>,
    return
  }
  func.func @transform_0(%arg0: i32) -> (i32, i32) {
    %c0_i32 = arith.constant 0 : i32
    %c0_i32_0 = arith.constant 0 : i32
    return %arg0, %c0_i32 : i32, i32
  }
  func.func @transform_1(%arg0: i32) -> (i32, i32) {
    %c0_i32 = arith.constant 0 : i32
    %c0_i32_0 = arith.constant 0 : i32
    %c0_i32_1 = arith.constant 0 : i32
    return %c0_i32, %c0_i32_0 : i32, i32
  }
  func.func @transform_2(%arg0: i32) -> (i32, i32) {
    %c0_i32 = arith.constant 0 : i32
    %c0_i32_0 = arith.constant 0 : i32
    %c0_i32_1 = arith.constant 0 : i32
    return %c0_i32, %c0_i32_0 : i32, i32
  }
  func.func @transform_3(%arg0: i32) -> (i32, i32) {
    %c0_i32 = arith.constant 0 : i32
    %c0_i32_0 = arith.constant 0 : i32
    %c0_i32_1 = arith.constant 0 : i32
    return %c0_i32, %c0_i32_0 : i32, i32
  }
  func.func @transform_4(%arg0: i32) -> (i32, i32) {
    %c0_i32 = arith.constant 0 : i32
    %c0_i32_0 = arith.constant 0 : i32
    %c0_i32_1 = arith.constant 0 : i32
    return %c0_i32, %c0_i32_0 : i32, i32
  }
  func.func @transform_5(%arg0: i32) -> (i32, i32) {
    %c0_i32 = arith.constant 0 : i32
    %c0_i32_0 = arith.constant 0 : i32
    %c0_i32_1 = arith.constant 0 : i32
    return %c0_i32, %c0_i32_0 : i32, i32
  }
  func.func @transform_6(%arg0: i32) -> (i32, i32) {
    %c0_i32 = arith.constant 0 : i32
    %c0_i32_0 = arith.constant 0 : i32
    return %arg0, %c0_i32 : i32, i32
  }
}

</mosaic_0001>

<llo_original>
// kernel: tpu_custom_call.1
$region0: #{tpu_custom_call.1}
  #allocation0 [shape = 'u32[]', space=smem, size = 0x4, offset = 0x4, fixed_abs, tag = 'smem constant byte address 0x4 - core index']
  #allocation1 [shape = 'u32[144,128]{1,0:T(1,128)}', space=vmem, size = 0x12000, scoped, tag = 'internal scratch']
  %s0 = inlined_call_operand.vmem [shape: f32[16,2], index: 0, kind: input, shape index: {}]
  %s1 = inlined_call_operand.vmem [shape: s32[1,128], index: 1, kind: input, shape index: {}]
  %s2 = inlined_call_operand.hbm [shape: f32[256,128], index: 2, kind: input, shape index: {}]
  %s3 = inlined_call_operand.vmem [shape: f32[1,128], index: 3, kind: input, shape index: {}]
  %s4 = inlined_call_operand.vmem [shape: f32[1,128], index: 4, kind: input, shape index: {}]
  %s5 = inlined_call_operand.vmem [shape: f32[1,128], index: 5, kind: input, shape index: {}]
  %s6 = inlined_call_operand.hbm [shape: f32[16,128], index: 6, kind: output, shape index: {}]
  %s7 = sld [smem:[#allocation0]]
  $region61: #{tpu_custom_call.1} parent=0
    _
  %s9 = ssub.s32 1, %s7
  %s10 = scalar_select 0, %s9, %s7
  $region1: #{tpu_custom_call.1} parent=0
    #allocation2 [shape = 'u8[131072]{0}', space=vmem, size = 0x20000, scoped, tag = 'input window, operand 2, single buffered']
    #allocation3 [shape = 's32[2]{0}', space=sflag, size = 0x8, scoped, tag = 'scoped memory for tpu_custom_call.1']
    #allocation4 [shape = 's32[2]{0}', space=sflag, size = 0x8, scoped, tag = 'scoped memory for tpu_custom_call.1']
    #allocation5 [shape = 'u8[8192]{0}', space=vmem, size = 0x2000, scoped, tag = 'output window, operand 0']
    %11 = vsyncpa [#allocation3], 0
    %12 = vsyncpa [#allocation4], 0
    %s13 = scalar_lea.sflag [#allocation4], 1
    %14 = vsyncpa %s13, 0
    loop: start=0, step=1, limit=4
    $region2: #{tpu_custom_call.1} parent=1 // loop_pre_header
      _
    $region3: #{tpu_custom_call.1} parent=1 // loop_header
      %s16 = sphi 0, %s20
      %p17 = scmp.ge.s32.totalorder %s16, 4
      %s26 = sphi 0, %s28
      %s29 = sphi 0, %s26
      %s30 = sphi 0, %s29
      %s46 = sphi 0, %s30
      %s50 = sphi 0, %s50
      %s52 = sphi 0, %s50
      %s53 = sphi 0, %s52
      %s67 = sphi 0, %s53
      %s71 = sphi 0, %s71
      %s73 = sphi 0, %s71
      %s74 = sphi 0, %s73
      %s88 = sphi 0, %s74
      %s92 = sphi 0, %s92
      %s94 = sphi 0, %s92
      %s95 = sphi 0, %s94
      %s109 = sphi 0, %s95
      %s113 = sphi 0, %s113
      %s115 = sphi 0, %s113
      %s116 = sphi 0, %s115
      %s130 = sphi 0, %s116
      %s134 = sphi 0, %s134
      %s136 = sphi 0, %s134
      %s137 = sphi 0, %s136
      %s151 = sphi 0, %s137
      %s157 = sphi 0, %s159
      %s160 = sphi 0, %s157
      %s161 = sphi 0, %s160
      %s177 = sphi 0, %s161
    $region4: #{tpu_custom_call.1} parent=1 // loop_header_branch
      %19 = sbr.rel (%p17) target = $region8
    $region5: #{tpu_custom_call.1} parent=1 // loop_body
      %s21 = ssub.s32 %s16, 1
      %s22 = ssub.s32 %s16, 2
      %s23 = sadd.s32 %s16, 1
      %s24 = ssub.s32 %s16, %s23
      %p25 = scmp.eq.s32.totalorder %s24, 0
      %s27 = sadd.s32 %s26, 1
      %s28 = scalar_select %p25, %s26, %s27
      %p31 = pneg %p25
      %p32 = scmp.eq.s32.totalorder %s16, 1
      %p33 = por %p31, %p32
      %p34 = scmp.ne.s32.totalorder %s26, %s29
      %p35 = scmp.eq.s32.totalorder %s16, 0
      %p36 = por %p34, %p35
      %p37 = scmp.ne.s32.totalorder %s26, %s29
      %p38 = scmp.eq.s32.totalorder %s21, 1
      %p39 = por %p37, %p38
      %p40 = scmp.ne.s32.totalorder %s29, %s30
      %p41 = scmp.eq.s32.totalorder %s21, 0
      %p42 = por %p40, %p41
      %p43 = scmp.ne.s32.totalorder %s29, %s30
      %p44 = scmp.eq.s32.totalorder %s22, 1
      %p45 = por %p43, %p44
      %p47 = scmp.ne.s32.totalorder %s30, %s46
      %p48 = scmp.eq.s32.totalorder %s22, 0
      %p49 = por %p47, %p48
      %s51 = sadd.s32 %s50, 1
      %p54 = scmp.eq.s32.totalorder %s16, 1
      %p55 = scmp.ne.s32.totalorder %s50, %s52
      %p56 = scmp.eq.s32.totalorder %s16, 0
      %p57 = por %p55, %p56
      %p58 = scmp.ne.s32.totalorder %s50, %s52
      %p59 = scmp.eq.s32.totalorder %s21, 1
      %p60 = por %p58, %p59
      %p61 = scmp.ne.s32.totalorder %s52, %s53
      %p62 = scmp.eq.s32.totalorder %s21, 0
      %p63 = por %p61, %p62
      %p64 = scmp.ne.s32.totalorder %s52, %s53
      %p65 = scmp.eq.s32.totalorder %s22, 1
      %p66 = por %p64, %p65
      %p68 = scmp.ne.s32.totalorder %s53, %s67
      %p69 = scmp.eq.s32.totalorder %s22, 0
      %p70 = por %p68, %p69
      %s72 = sadd.s32 %s71, 1
      %p75 = scmp.eq.s32.totalorder %s16, 1
      %p76 = scmp.ne.s32.totalorder %s71, %s73
      %p77 = scmp.eq.s32.totalorder %s16, 0
      %p78 = por %p76, %p77
      %p79 = scmp.ne.s32.totalorder %s71, %s73
      %p80 = scmp.eq.s32.totalorder %s21, 1
      %p81 = por %p79, %p80
      %p82 = scmp.ne.s32.totalorder %s73, %s74
      %p83 = scmp.eq.s32.totalorder %s21, 0
      %p84 = por %p82, %p83
      %p85 = scmp.ne.s32.totalorder %s73, %s74
      %p86 = scmp.eq.s32.totalorder %s22, 1
      %p87 = por %p85, %p86
      %p89 = scmp.ne.s32.totalorder %s74, %s88
      %p90 = scmp.eq.s32.totalorder %s22, 0
      %p91 = por %p89, %p90
      %s93 = sadd.s32 %s92, 1
      %p96 = scmp.eq.s32.totalorder %s16, 1
      %p97 = scmp.ne.s32.totalorder %s92, %s94
      %p98 = scmp.eq.s32.totalorder %s16, 0
      %p99 = por %p97, %p98
      %p100 = scmp.ne.s32.totalorder %s92, %s94
      %p101 = scmp.eq.s32.totalorder %s21, 1
      %p102 = por %p100, %p101
      %p103 = scmp.ne.s32.totalorder %s94, %s95
      %p104 = scmp.eq.s32.totalorder %s21, 0
      %p105 = por %p103, %p104
      %p106 = scmp.ne.s32.totalorder %s94, %s95
      %p107 = scmp.eq.s32.totalorder %s22, 1
      %p108 = por %p106, %p107
      %p110 = scmp.ne.s32.totalorder %s95, %s109
      %p111 = scmp.eq.s32.totalorder %s22, 0
      %p112 = por %p110, %p111
      %s114 = sadd.s32 %s113, 1
      %p117 = scmp.eq.s32.totalorder %s16, 1
      %p118 = scmp.ne.s32.totalorder %s113, %s115
      %p119 = scmp.eq.s32.totalorder %s16, 0
      %p120 = por %p118, %p119
      %p121 = scmp.ne.s32.totalorder %s113, %s115
      %p122 = scmp.eq.s32.totalorder %s21, 1
      %p123 = por %p121, %p122
      %p124 = scmp.ne.s32.totalorder %s115, %s116
      %p125 = scmp.eq.s32.totalorder %s21, 0
      %p126 = por %p124, %p125
      %p127 = scmp.ne.s32.totalorder %s115, %s116
      %p128 = scmp.eq.s32.totalorder %s22, 1
      %p129 = por %p127, %p128
      %p131 = scmp.ne.s32.totalorder %s116, %s130
      %p132 = scmp.eq.s32.totalorder %s22, 0
      %p133 = por %p131, %p132
      %s135 = sadd.s32 %s134, 1
      %p138 = scmp.eq.s32.totalorder %s16, 1
      %p139 = scmp.ne.s32.totalorder %s134, %s136
      %p140 = scmp.eq.s32.totalorder %s16, 0
      %p141 = por %p139, %p140
      %p142 = scmp.ne.s32.totalorder %s134, %s136
      %p143 = scmp.eq.s32.totalorder %s21, 1
      %p144 = por %p142, %p143
      %p145 = scmp.ne.s32.totalorder %s136, %s137
      %p146 = scmp.eq.s32.totalorder %s21, 0
      %p147 = por %p145, %p146
      %p148 = scmp.ne.s32.totalorder %s136, %s137
      %p149 = scmp.eq.s32.totalorder %s22, 1
      %p150 = por %p148, %p149
      %p152 = scmp.ne.s32.totalorder %s137, %s151
      %p153 = scmp.eq.s32.totalorder %s22, 0
      %p154 = por %p152, %p153
      %s155 = ssub.s32 %s16, %s23
      %p156 = scmp.eq.s32.totalorder %s155, 0
      %s158 = sadd.s32 %s157, 1
      %s159 = scalar_select %p156, %s157, %s158
      %p162 = pneg %p156
      %p163 = scmp.eq.s32.totalorder %s16, 1
      %p164 = por %p162, %p163
      %p165 = scmp.ne.s32.totalorder %s157, %s160
      %p166 = scmp.eq.s32.totalorder %s16, 0
      %p167 = por %p165, %p166
      %p168 = scmp.ne.s32.totalorder %s157, %s160
      %p169 = scmp.eq.s32.totalorder %s21, 1
      %p170 = por %p168, %p169
      %p171 = scmp.ne.s32.totalorder %s160, %s161
      %p172 = scmp.eq.s32.totalorder %s21, 0
      %p173 = por %p171, %p172
      %p174 = scmp.ne.s32.totalorder %s160, %s161
      %p175 = scmp.eq.s32.totalorder %s22, 1
      %p176 = por %p174, %p175
      %p178 = scmp.ne.s32.totalorder %s161, %s177
      %p179 = scmp.eq.s32.totalorder %s22, 0
      %p180 = por %p178, %p179
      %p181 = scmp.le.s32.totalorder 1, %s16
      %p182 = scmp.lt.s32.totalorder %s16, 3
      %p183 = pnand %p181, %p182
      %p184 = pneg %p183
      // Predicated region
      $region9: #{tpu_custom_call.1} parent=5 // pred_check
        _
      $region10: #{tpu_custom_call.1} parent=5 // pred_check_branch
        %186 = sbr.rel (%p183) target = $region12
      $region11: #{tpu_custom_call.1} parent=5 // pred_region
        %s187 = ssub.s32 %s16, 1
        // Predicated region
        $region13: #{tpu_custom_call.1} parent=11 // pred_check
          %p188 = pneg %p63
        $region14: #{tpu_custom_call.1} parent=11 // pred_check_branch
          %190 = sbr.rel (%p188) target = $region16
        $region15: #{tpu_custom_call.1} parent=11 // pred_region
          _
        $region16: #{tpu_custom_call.1} parent=11 // pred_fallthru
          _
        // Predicated region
        $region17: #{tpu_custom_call.1} parent=11 // pred_check
          %p191 = pneg %p84
        $region18: #{tpu_custom_call.1} parent=11 // pred_check_branch
          %193 = sbr.rel (%p191) target = $region20
        $region19: #{tpu_custom_call.1} parent=11 // pred_region
          %s195 = ssub.s32 4096, 4096
          %196 = vsyncadd [#allocation3], %s195
          %s197 = sshll.u32 [#allocation2], 4
          %s198 = int_to_ptr.vmem [resolvable:$true] %s197
          %203 = dma.hbm_to_vmem [thread:$0]  %s2, 4096, %s198, [#allocation3], 128, 128, 8
        $region20: #{tpu_custom_call.1} parent=11 // pred_fallthru
          _
        // Predicated region
        $region21: #{tpu_custom_call.1} parent=11 // pred_check
          %p204 = pneg %p105
        $region22: #{tpu_custom_call.1} parent=11 // pred_check_branch
          %206 = sbr.rel (%p204) target = $region24
        $region23: #{tpu_custom_call.1} parent=11 // pred_region
          _
        $region24: #{tpu_custom_call.1} parent=11 // pred_fallthru
          _
        // Predicated region
        $region25: #{tpu_custom_call.1} parent=11 // pred_check
          %p207 = pneg %p126
        $region26: #{tpu_custom_call.1} parent=11 // pred_check_branch
          %209 = sbr.rel (%p207) target = $region28
        $region27: #{tpu_custom_call.1} parent=11 // pred_region
          _
        $region28: #{tpu_custom_call.1} parent=11 // pred_fallthru
          _
        // Predicated region
        $region29: #{tpu_custom_call.1} parent=11 // pred_check
          %p210 = pneg %p147
        $region30: #{tpu_custom_call.1} parent=11 // pred_check_branch
          %212 = sbr.rel (%p210) target = $region32
        $region31: #{tpu_custom_call.1} parent=11 // pred_region
          _
        $region32: #{tpu_custom_call.1} parent=11 // pred_fallthru
          _
      $region12: #{tpu_custom_call.1} parent=5 // pred_fallthru
        _
      %p213 = scmp.lt.s32.totalorder %s16, 2
      // Predicated region
      $region33: #{tpu_custom_call.1} parent=5 // pred_check
        %p214 = pneg %p213
      $region34: #{tpu_custom_call.1} parent=5 // pred_check_branch
        %216 = sbr.rel (%p214) target = $region36
      $region35: #{tpu_custom_call.1} parent=5 // pred_region
        // Predicated region
        $region37: #{tpu_custom_call.1} parent=35 // pred_check
          %p217 = pneg %p36
        $region38: #{tpu_custom_call.1} parent=35 // pred_check_branch
          %219 = sbr.rel (%p217) target = $region40
        $region39: #{tpu_custom_call.1} parent=35 // pred_region
          %p220 = scmp.lt.s32.totalorder %s16, 1
          %s221 = scalar_select %p220, %s16, 1
          %s222 = smul.addr %s221, 8
          %s223 = scalar_lea.vmem %s0, %s222
        $region40: #{tpu_custom_call.1} parent=35 // pred_fallthru
          _
      $region36: #{tpu_custom_call.1} parent=5 // pred_fallthru
        _
      %p224 = scmp.le.s32.totalorder 1, %s16
      %p225 = scmp.lt.s32.totalorder %s16, 3
      %p226 = pnand %p224, %p225
      %p227 = pneg %p226
      // Predicated region
      $region41: #{tpu_custom_call.1} parent=5 // pred_check
        _
      $region42: #{tpu_custom_call.1} parent=5 // pred_check_branch
        %229 = sbr.rel (%p226) target = $region44
      $region43: #{tpu_custom_call.1} parent=5 // pred_region
        %s230 = ssub.s32 %s16, 1
        // Predicated region
        $region45: #{tpu_custom_call.1} parent=43 // pred_check
          %p231 = pneg %p84
        $region46: #{tpu_custom_call.1} parent=43 // pred_check_branch
          %233 = sbr.rel (%p231) target = $region48
        $region47: #{tpu_custom_call.1} parent=43 // pred_region
          %234 = dma.done [#allocation3], 4096
        $region48: #{tpu_custom_call.1} parent=43 // pred_fallthru
          _
        %p235 = scmp.lt.s32.totalorder %s21, 1
        %s236 = scalar_select %p235, %s21, 1
        %s237 = smul.addr %s236, 8
        %s238 = scalar_lea.vmem %s0, %s237
        %p239 = pneg %p42
        %p240 = pneg %p39
        %p241 = pneg %p63
        %p242 = pneg %p60
        %p243 = pneg %p84
        %p244 = pneg %p81
        %p245 = pneg %p105
        %p246 = pneg %p102
        %p247 = pneg %p126
        %p248 = pneg %p123
        %p249 = pneg %p147
        %p250 = pneg %p144
        %p251 = pneg %p173
        %p252 = pneg %p170
        %s253 = sand.u32 %s160, 1
        %s254 = scalar_lea.sflag [#allocation4], %s253
        %s255 = sand.u32 %s160, 1
        %s256 = smul.addr %s255, 8
        %s257 = scalar_lea.vmem [#allocation5], %s256
        %p258 = scmp.lt.s32.totalorder %s21, 1
        %s259 = scalar_select %p258, %s21, 1
        %s260 = smul.addr %s259, 8
        %s261 = scalar_lea.vmem %s0, %s260
        %v262 = vld [vmem:[%s261] sm:$0xff]
        %vm263 = vweird.f32 %v262
        %vm264 = vmxor %vm263, 1
        %v265 = vcvt.f32.s32.to.zero.pseudo %v262
        %vm266 = vcmp.lt.s32.totalorder %v265, 0
        %v267 = vadd.s32 %v265, 128
        %v268 = vsel %vm266, %v267, %v265
        %269 = vrot.lane.b32.xlu0 %v268, 1
        %v270 = vpop.permute.xlu0 %269
        %v271 = vsel %vm264, 4294967295, %v270
        %v272 = vld [vmem:[%s1] sm:$0x1]
        %273 = vset.pattern.permute.xlu0 1
        %274 = vperm.xlu0 %273, %v271
        %v275 = vpop.permute.xlu0 %274
        %v276 = vlaneseq
        %v277 = vshrl.u32 %v276, 7
        %v278 = vsub.s32 0, %v277
        %v279 = vrot.slane %v272, %v278
        %vm280 = vcmp.eq.s32.totalorder %v275, %v279
        %v281 = vsel %vm264, %v262, 0.0
        %v282 = vld [vmem:[%s3] sm:$0x1]
        %284 = vset.pattern.permute.xlu0 1
        %285 = vperm.xlu0 %284, %v281
        %v286 = vpop.permute.xlu0 %285
        %v289 = vlaneseq
        %v290 = vshrl.u32 %v289, 7
        %v291 = vsub.s32 0, %v290
        %v292 = vrot.slane %v282, %v291
        %v294 = vmul.f32 %v286, %v292
        %v295 = vld [vmem:[%s4] sm:$0x1]
        %v297 = vlaneseq
        %v298 = vshrl.u32 %v297, 7
        %v299 = vsub.s32 0, %v298
        %v300 = vrot.slane %v295, %v299
        %v302 = vadd.f32 %v294, %v300
        %v303 = vmax.f32 %v302, 0.0
        %v304 = vsel %vm264, 1, 0
        %305 = vset.pattern.permute.xlu0 1
        %306 = vperm.xlu0 %305, %v304
        %v307 = vpop.permute.xlu0 %306
        %vm308 = vcmp.eq.s32.totalorder %v307, 1
        %v309 = vsel %vm308, %v303, 0.0
        %v310 = vsel %vm280, 1, 0
        %v311 = vcvt.s32.f32 %v310
        %v312 = vld [vmem:[#allocation2] sm:$0xff]
        %v313 = vld [vmem:[#allocation2 + $0x8] sm:$0xff]
        %v314 = vld [vmem:[#allocation2 + $0x10] sm:$0xff]
        %v315 = vld [vmem:[#allocation2 + $0x18] sm:$0xff]
        %v316 = vld [vmem:[#allocation2 + $0x20] sm:$0xff]
        %v317 = vld [vmem:[#allocation2 + $0x28] sm:$0xff]
        %v318 = vld [vmem:[#allocation2 + $0x30] sm:$0xff]
        %v319 = vld [vmem:[#allocation2 + $0x38] sm:$0xff]
        %v320 = vld [vmem:[#allocation2 + $0x40] sm:$0xff]
        %v321 = vld [vmem:[#allocation2 + $0x48] sm:$0xff]
        %v322 = vld [vmem:[#allocation2 + $0x50] sm:$0xff]
        %v323 = vld [vmem:[#allocation2 + $0x58] sm:$0xff]
        %v324 = vld [vmem:[#allocation2 + $0x60] sm:$0xff]
        %v325 = vld [vmem:[#allocation2 + $0x68] sm:$0xff]
        %v326 = vld [vmem:[#allocation2 + $0x70] sm:$0xff]
        %v327 = vld [vmem:[#allocation2 + $0x78] sm:$0xff]
        %v328 = vld [vmem:[#allocation2 + $0x80] sm:$0xff]
        %v329 = vld [vmem:[#allocation2 + $0x88] sm:$0xff]
        %v330 = vld [vmem:[#allocation2 + $0x90] sm:$0xff]
        %v331 = vld [vmem:[#allocation2 + $0x98] sm:$0xff]
        %v332 = vld [vmem:[#allocation2 + $0xa0] sm:$0xff]
        %v333 = vld [vmem:[#allocation2 + $0xa8] sm:$0xff]
        %v334 = vld [vmem:[#allocation2 + $0xb0] sm:$0xff]
        %v335 = vld [vmem:[#allocation2 + $0xb8] sm:$0xff]
        %v336 = vld [vmem:[#allocation2 + $0xc0] sm:$0xff]
        %v337 = vld [vmem:[#allocation2 + $0xc8] sm:$0xff]
        %v338 = vld [vmem:[#allocation2 + $0xd0] sm:$0xff]
        %v339 = vld [vmem:[#allocation2 + $0xd8] sm:$0xff]
        %v340 = vld [vmem:[#allocation2 + $0xe0] sm:$0xff]
        %v341 = vld [vmem:[#allocation2 + $0xe8] sm:$0xff]
        %v342 = vld [vmem:[#allocation2 + $0xf0] sm:$0xff]
        %v343 = vld [vmem:[#allocation2 + $0xf8] sm:$0xff]
        %v344 = vld [vmem:[%s5] sm:$0x1]
        %v346 = vlaneseq
        %v347 = vshrl.u32 %v346, 7
        %v348 = vsub.s32 0, %v347
        %v349 = vrot.slane %v344, %v348
        %v351 = vsel %vm308, %v349, 0.0
        %352 = vmatprep.subr.mxu0 0.0
        %353 = vmatpush1.msra.mxu0 %v327
        %354 = vmatprep.subr.mxu0 0.0
        %355 = vmatpush1.msra.mxu0 %v326
        %356 = vmatprep.subr.mxu0 0.0
        %357 = vmatpush1.msra.mxu0 %v325
        %358 = vmatprep.subr.mxu0 0.0
        %359 = vmatpush1.msra.mxu0 %v324
        %360 = vmatprep.subr.mxu0 0.0
        %361 = vmatpush1.msra.mxu0 %v323
        %362 = vmatprep.subr.mxu0 0.0
        %363 = vmatpush1.msra.mxu0 %v322
        %364 = vmatprep.subr.mxu0 0.0
        %365 = vmatpush1.msra.mxu0 %v321
        %366 = vmatprep.subr.mxu0 0.0
        %367 = vmatpush1.msra.mxu0 %v320
        %368 = vmatprep.subr.mxu0 0.0
        %369 = vmatpush1.msra.mxu0 %v319
        %370 = vmatprep.subr.mxu0 0.0
        %371 = vmatpush1.msra.mxu0 %v318
        %372 = vmatprep.subr.mxu0 0.0
        %373 = vmatpush1.msra.mxu0 %v317
        %374 = vmatprep.subr.mxu0 0.0
        %375 = vmatpush1.msra.mxu0 %v316
        %376 = vmatprep.subr.mxu0 0.0
        %377 = vmatpush1.msra.mxu0 %v315
        %378 = vmatprep.subr.mxu0 0.0
        %379 = vmatpush1.msra.mxu0 %v314
        %380 = vmatprep.subr.mxu0 0.0
        %381 = vmatpush1.msra.mxu0 %v313
        %382 = vmatprep.subr.mxu0 0.0
        %383 = vmatpush1.msra.mxu0 %v312
        %384 = vmatprep.subr.mxu0 0.0
        %385 = vmatpush2.msra.mxu0 %v343
        %386 = vmatprep.subr.mxu0 0.0
        %387 = vmatpush2.msra.mxu0 %v342
        %388 = vmatprep.subr.mxu0 0.0
        %389 = vmatpush2.msra.mxu0 %v341
        %390 = vmatprep.subr.mxu0 0.0
        %391 = vmatpush2.msra.mxu0 %v340
        %392 = vmatprep.subr.mxu0 0.0
        %393 = vmatpush2.msra.mxu0 %v339
        %394 = vmatprep.subr.mxu0 0.0
        %395 = vmatpush2.msra.mxu0 %v338
        %396 = vmatprep.subr.mxu0 0.0
        %397 = vmatpush2.msra.mxu0 %v337
        %398 = vmatprep.subr.mxu0 0.0
        %399 = vmatpush2.msra.mxu0 %v336
        %400 = vmatprep.subr.mxu0 0.0
        %401 = vmatpush2.msra.mxu0 %v335
        %402 = vmatprep.subr.mxu0 0.0
        %403 = vmatpush2.msra.mxu0 %v334
        %404 = vmatprep.subr.mxu0 0.0
        %405 = vmatpush2.msra.mxu0 %v333
        %406 = vmatprep.subr.mxu0 0.0
        %407 = vmatpush2.msra.mxu0 %v332
        %408 = vmatprep.subr.mxu0 0.0
        %409 = vmatpush2.msra.mxu0 %v331
        %410 = vmatprep.subr.mxu0 0.0
        %411 = vmatpush2.msra.mxu0 %v330
        %412 = vmatprep.subr.mxu0 0.0
        %413 = vmatpush2.msra.mxu0 %v329
        %414 = vmatprep.subr.mxu0 0.0
        %415 = vmatpush2.msra.mxu0 %v328
        %416 = vmatprep.mubr.f32.mxu0 %v309
        %417 = vmatmul.mubr.f32.gmra.mxu0 %v311
        %v418 = vpop.f32.mrf.mxu0
        %v419 = vadd.f32 %v351, %v418
        %v420 = vpop.f32.mrf.mxu0
        %421 = vdwg.mxu0
        %422 = vst [vmem:[%s257] sm:$0xff] %v419
        %s423 = sand.u32 %s160, 1
        %s424 = scalar_lea.sflag [#allocation4], %s423
        %s425 = sand.u32 %s160, 1
        %s426 = smul.addr %s425, 8
        %s427 = scalar_lea.vmem [#allocation5], %s426
        // Predicated region
        $region49: #{tpu_custom_call.1} parent=43 // pred_check
          %p428 = pneg %p170
        $region50: #{tpu_custom_call.1} parent=43 // pred_check_branch
          %430 = sbr.rel (%p428) target = $region52
        $region51: #{tpu_custom_call.1} parent=43 // pred_region
          %s432 = ssub.s32 128, 128
          %433 = vsyncadd %s424, %s432
          %s434 = smul.addr %s21, 128
          %s435 = scalar_lea.hbm %s6, %s434
          %s437 = sshll.u32 %s427, 4
          %s438 = int_to_ptr.vmem [resolvable:$true] %s437
          %440 = dma.vmem_to_hbm [thread:$0]  %s438, 128, %s435, %s424
        $region52: #{tpu_custom_call.1} parent=43 // pred_fallthru
          _
      $region44: #{tpu_custom_call.1} parent=5 // pred_fallthru
        _
      %p441 = scmp.le.s32.totalorder 2, %s16
      // Predicated region
      $region53: #{tpu_custom_call.1} parent=5 // pred_check
        %p442 = pneg %p441
      $region54: #{tpu_custom_call.1} parent=5 // pred_check_branch
        %444 = sbr.rel (%p442) target = $region56
      $region55: #{tpu_custom_call.1} parent=5 // pred_region
        %s445 = ssub.s32 %s16, 2
        // Predicated region
        $region57: #{tpu_custom_call.1} parent=55 // pred_check
          %p446 = pneg %p176
        $region58: #{tpu_custom_call.1} parent=55 // pred_check_branch
          %448 = sbr.rel (%p446) target = $region60
        $region59: #{tpu_custom_call.1} parent=55 // pred_region
          %s449 = sand.u32 %s161, 1
          %s450 = scalar_lea.sflag [#allocation4], %s449
          %s451 = sand.u32 %s161, 1
          %s452 = smul.addr %s451, 8
          %s453 = scalar_lea.vmem [#allocation5], %s452
          %454 = dma.done %s450, 128
        $region60: #{tpu_custom_call.1} parent=55 // pred_fallthru
          _
      $region56: #{tpu_custom_call.1} parent=5 // pred_fallthru
        _
    $region6: #{tpu_custom_call.1} parent=1 // loop_footer
      %s20 = sadd.s32 1, %s16
    $region7: #{tpu_custom_call.1} parent=1 // loop_footer_branch
      %15 = sbr.rel target = $region3
    $region8: #{tpu_custom_call.1} parent=1 // loop_exit
      _
    %455 = vsyncpa [#allocation3], 1
    %s456 = scalar_lea.sflag [#allocation3], 1
    %457 = vsyncpa %s456, 1
    %458 = vsyncpa [#allocation4], 1
    %s459 = scalar_lea.sflag [#allocation4], 1
    %460 = vsyncpa %s459, 1

</llo_original>
